<compile_context>
chip_gen: v6e
topology: v6e:2x2x1
jax: 0.10.0
libtpu: 0.0.40
codegen_flags: <defaults>
</compile_context>

<pallas_src>
import functools

import jax
import jax.numpy as jnp
from jax import lax
from jax.experimental import pallas as pl
from jax.experimental.pallas import tpu as pltpu

# bf16 operands + f32 accumulation on the MXU (v6e/v7x native, supported on v5e).
# Set to jnp.float32 for bit-closer parity with the f32 PyTorch module.
MXU_DTYPE = jnp.bfloat16


def head_kernel(x_ref, w_ref, cos_ref, sin_ref, o_ref, *, head_size, mxu_dtype):
    """One grid step == one batch element (grid=(B,), "parallel").

    x_ref:   (T, D)       this batch's tokens (batch dim squeezed by BlockSpec)
    w_ref:   (D, 4K + D)  fused [Wq*s | (Wq R)*s | Wk | Wk R | Wv], resident
    cos_ref: (T, K)       RoPE cos table (f32), resident across the batch axis
    sin_ref: (T, K)       RoPE sin table (f32), resident across the batch axis
    o_ref:   (T, D)       f32 output tile for this batch
    """
    f32 = jnp.float32
    K = head_size
    T = x_ref.shape[0]

    # One wide MXU matmul produces q, rotate_half(q), k, rotate_half(k), v at once.
    x = x_ref[...].astype(mxu_dtype)                                   # (T, D)
    qkv = jnp.dot(x, w_ref[...], preferred_element_type=f32)           # (T, 4K + D)

    q0 = qkv[:, 0 * K:1 * K]          # (x @ Wq) / sqrt(K)
    q1 = qkv[:, 1 * K:2 * K]          # rotate_half of the above (R folded into W)
    k0 = qkv[:, 2 * K:3 * K]          # x @ Wk
    k1 = qkv[:, 3 * K:4 * K]          # rotate_half(x @ Wk)
    v = qkv[:, 4 * K:].astype(mxu_dtype)                               # (T, D)

    # RoPE (elementwise, f32): q = q*cos + rotate_half(q)*sin.
    cos = cos_ref[...]
    sin = sin_ref[...]
    q = (q0 * cos + q1 * sin).astype(mxu_dtype)                        # (T, K)
    k = (k0 * cos + k1 * sin).astype(mxu_dtype)                        # (T, K)

    # Scores: q @ k.T without materializing a transposed copy of k.
    nt = (((1,), (1,)), ((), ()))
    s = lax.dot_general(q, k, nt, preferred_element_type=f32)          # (T, T)

    # Causal mask generated in-kernel (VPU compare+select) -- no (T,T) bias input.
    row = lax.broadcasted_iota(jnp.int32, (T, T), 0)
    col = lax.broadcasted_iota(jnp.int32, (T, T), 1)
    s = jnp.where(row >= col, s, -jnp.inf)

    # Softmax; the diagonal is never masked, so the denominator is always > 0.
    m = jnp.max(s, axis=-1, keepdims=True)
    p = jnp.exp(s - m)
    denom = jnp.sum(p, axis=-1, keepdims=True)
    w = p * pl.reciprocal(denom, approx=True)                          # EUP reciprocal

    o_ref[...] = jnp.dot(w.astype(mxu_dtype), v,
                         preferred_element_type=f32).astype(o_ref.dtype)


def rope_tables(seq, head_size):
    """Half-split (GPT-NeoX style) RoPE cos/sin tables, theta=10000."""
    # TODO(synk): RotaryPositionalEmbedding is not defined in the reference source; this
    # assumes the half-split (NeoX) convention. If the original used interleaved (GPT-J)
    # pairs, swap these tables and rotate_half_matrix() to that layout.
    half = head_size // 2
    inv_freq = 1.0 / (10000.0 ** (jnp.arange(half, dtype=jnp.float32) * 2.0 / head_size))
    t = jnp.arange(seq, dtype=jnp.float32)
    freqs = jnp.outer(t, inv_freq)                                     # (T, K/2)
    emb = jnp.concatenate([freqs, freqs], axis=-1)                     # (T, K)
    return jnp.cos(emb), jnp.sin(emb)


def rotate_half_matrix(head_size):
    """(K, K) signed permutation R with  t @ R == concat(-t[:, K/2:], t[:, :K/2])."""
    half = head_size // 2
    eye = jnp.eye(half, dtype=jnp.float32)
    zero = jnp.zeros((half, half), dtype=jnp.float32)
    top = jnp.concatenate([zero, eye], axis=1)    # rows 0..half-1  -> +1 into cols half..K-1
    bot = jnp.concatenate([-eye, zero], axis=1)   # rows half..K-1  -> -1 into cols 0..half-1
    return jnp.concatenate([top, bot], axis=0)


def head_forward(x, wq, wk, wv, *, mxu_dtype=MXU_DTYPE):
    """x: (B, T, D); wq/wk: (D, K); wv: (D, D). Returns (B, T, D) float32."""
    B, T, D = x.shape
    K = wq.shape[1]
    scale = 1.0 / (K ** 0.5)

    # Fuse all projections into one wide weight; fold rotate_half (signed permutation R)
    # and the 1/sqrt(K) score scale into the relevant column groups.
    R = rotate_half_matrix(K)
    w_cat = jnp.concatenate(
        [wq * scale, (wq @ R) * scale, wk, wk @ R, wv], axis=1
    ).astype(mxu_dtype)                                                # (D, 4K + D)

    # RoPE tables once (NOT tiled over batch) -- resident across the batch grid axis.
    cos, sin = rope_tables(T, K)                                       # (T, K) f32 each

    kernel = functools.partial(head_kernel, head_size=K, mxu_dtype=mxu_dtype)

    return pl.pallas_call(
        kernel,
        out_shape=jax.ShapeDtypeStruct((B, T, D), jnp.float32),
        grid=(B,),
        in_specs=[
            pl.BlockSpec((None, T, D), lambda b: (b, 0, 0)),   # x: per-batch tile
            pl.BlockSpec((D, 4 * K + D), lambda b: (0, 0)),    # fused weights: resident
            pl.BlockSpec((T, K), lambda b: (0, 0)),            # cos: resident
            pl.BlockSpec((T, K), lambda b: (0, 0)),            # sin: resident
        ],
        out_specs=pl.BlockSpec((None, T, D), lambda b: (b, 0, 0)),
        compiler_params=pltpu.CompilerParams(
            # batch axis is independent -> megacore sharding across both TCs on v7x.
            dimension_semantics=("parallel",),
        ),
    )(x, w_cat, cos, sin)


def head_reference(x, wq, wk, wv):
    """Pure-JAX f32 reference (same half-split RoPE convention)."""
    B, T, D = x.shape
    K = wq.shape[1]
    q, k, v = x @ wq, x @ wk, x @ wv
    cos, sin = rope_tables(T, K)
    half = K // 2

    def rope(t):
        rot = jnp.concatenate([-t[..., half:], t[..., :half]], axis=-1)
        return t * cos + rot * sin

    q, k = rope(q), rope(k)
    s = jnp.einsum('bqk,bsk->bqs', q, k) / (K ** 0.5)
    s = jnp.where(jnp.tril(jnp.ones((T, T), dtype=bool)), s, -jnp.inf)
    w = jax.nn.softmax(s, axis=-1)
    return jnp.einsum('bqs,bsd->bqd', w, v)


if __name__ == "__main__":
    # Small shapes consistent with the module's forward (context_window_size == T).
    B, T, D, HEAD = 2, 8, 32, 16

    key = jax.random.PRNGKey(0)
    kx, kq, kk, kv = jax.random.split(key, 4)
    x = jax.random.normal(kx, (B, T, D), dtype=jnp.float32)
    # nn.Linear weights, stored pre-transposed (in_features, out_features).
    wq = jax.random.normal(kq, (D, HEAD), dtype=jnp.float32) * 0.02
    wk = jax.random.normal(kk, (D, HEAD), dtype=jnp.float32) * 0.02
    wv = jax.random.normal(kv, (D, D), dtype=jnp.float32) * 0.02

    out = head_forward(x, wq, wk, wv)
    jax.block_until_ready(out)
    assert out.shape == (B, T, D)

    ref = head_reference(x, wq, wk, wv)
    max_err = float(jnp.max(jnp.abs(out - ref)))
    assert max_err < 2e-2, f"mismatch vs reference: max abs err = {max_err}"
    print("KERNEL_OK")
</pallas_src>

<mosaic_0001>
module attributes {stable_mosaic.version = 11 : i64} {
  func.func @head_kernel(%arg0: i32, %arg1: memref<1x8x32xf32, #tpu.memory_space<vmem>>, %arg2: memref<32x96xbf16, #tpu.memory_space<vmem>>, %arg3: memref<8x16xf32, #tpu.memory_space<vmem>>, %arg4: memref<8x16xf32, #tpu.memory_space<vmem>>, %arg5: memref<1x8x32xf32, #tpu.memory_space<vmem>>) attributes {dimension_semantics = [#tpu.dimension_semantics<parallel>], iteration_bounds = array<i64: 2>, scalar_prefetch = 0 : i64, scratch_operands = 0 : i64, tpu.core_type = #tpu.core_type<tc>, window_params = [{transform_indices = @transform_0, window_bounds = array<i64: 1, 8, 32>}, {pipeline_mode = #tpu.pipeline_mode<synchronous>, transform_indices = @transform_1, window_bounds = array<i64: 32, 96>}, {pipeline_mode = #tpu.pipeline_mode<synchronous>, transform_indices = @transform_2, window_bounds = array<i64: 8, 16>}, {pipeline_mode = #tpu.pipeline_mode<synchronous>, transform_indices = @transform_3, window_bounds = array<i64: 8, 16>}, {transform_indices = @transform_4, window_bounds = array<i64: 1, 8, 32>}]} {
    %c0 = arith.constant 0 : index
    %c0_0 = arith.constant 0 : index
    %c0_1 = arith.constant 0 : index
    %0 = vector.load %arg1[%c0, %c0_0, %c0_1] : memref<1x8x32xf32, #tpu.memory_space<vmem>>, vector<1x8x32xf32>
    %1 = vector.shape_cast %0 : vector<1x8x32xf32> to vector<8x32xf32>
    %2 = arith.truncf %1 : vector<8x32xf32> to vector<8x32xbf16>
    %c0_2 = arith.constant 0 : index
    %c0_3 = arith.constant 0 : index
    %3 = vector.load %arg2[%c0_2, %c0_3] : memref<32x96xbf16, #tpu.memory_space<vmem>>, vector<32x96xbf16>
    %cst = arith.constant dense<0.000000e+00> : vector<8x96xf32>
    %4 = tpu.matmul %2, %3, %cst {dimension_numbers = #tpu.dot_dimension_numbers<[1], [0], [0], [1], [0, 0, 1, 1], [], []>} : vector<8x32xbf16>, vector<32x96xbf16>, vector<8x96xf32> -> vector<8x96xf32>
    %5 = vector.extract_strided_slice %4 {offsets = [0, 0], sizes = [8, 16], strides = [1, 1]} : vector<8x96xf32> to vector<8x16xf32>
    %6 = vector.extract_strided_slice %4 {offsets = [0, 16], sizes = [8, 16], strides = [1, 1]} : vector<8x96xf32> to vector<8x16xf32>
    %7 = vector.extract_strided_slice %4 {offsets = [0, 32], sizes = [8, 16], strides = [1, 1]} : vector<8x96xf32> to vector<8x16xf32>
    %8 = vector.extract_strided_slice %4 {offsets = [0, 48], sizes = [8, 16], strides = [1, 1]} : vector<8x96xf32> to vector<8x16xf32>
    %9 = vector.extract_strided_slice %4 {offsets = [0, 64], sizes = [8, 32], strides = [1, 1]} : vector<8x96xf32> to vector<8x32xf32>
    %10 = arith.truncf %9 : vector<8x32xf32> to vector<8x32xbf16>
    %c0_4 = arith.constant 0 : index
    %c0_5 = arith.constant 0 : index
    %11 = vector.load %arg3[%c0_4, %c0_5] : memref<8x16xf32, #tpu.memory_space<vmem>>, vector<8x16xf32>
    %c0_6 = arith.constant 0 : index
    %c0_7 = arith.constant 0 : index
    %12 = vector.load %arg4[%c0_6, %c0_7] : memref<8x16xf32, #tpu.memory_space<vmem>>, vector<8x16xf32>
    %13 = arith.mulf %5, %11 : vector<8x16xf32>
    %14 = arith.mulf %6, %12 : vector<8x16xf32>
    %15 = arith.addf %13, %14 : vector<8x16xf32>
    %16 = arith.truncf %15 : vector<8x16xf32> to vector<8x16xbf16>
    %17 = arith.mulf %7, %11 : vector<8x16xf32>
    %18 = arith.mulf %8, %12 : vector<8x16xf32>
    %19 = arith.addf %17, %18 : vector<8x16xf32>
    %20 = arith.truncf %19 : vector<8x16xf32> to vector<8x16xbf16>
    %cst_8 = arith.constant dense<0.000000e+00> : vector<8x8xf32>
    %21 = tpu.matmul %16, %20, %cst_8 {dimension_numbers = #tpu.dot_dimension_numbers<[1], [1], [0], [0], [0, 0, 1, 0], [], []>} : vector<8x16xbf16>, vector<8x16xbf16>, vector<8x8xf32> -> vector<8x8xf32>
    %22 = tpu.iota {dimensions = array<i32: 0>} : vector<8x8xi32>
    %23 = tpu.iota {dimensions = array<i32: 1>} : vector<8x8xi32>
    %24 = arith.cmpi sge, %22, %23 : vector<8x8xi32>
    %cst_9 = arith.constant 0xFF800000 : f32
    %25 = vector.broadcast %cst_9 : f32 to vector<8x8xf32>
    %26 = arith.select %24, %21, %25 : vector<8x8xi1>, vector<8x8xf32>
    %cst_10 = arith.constant dense<0xFF800000> : vector<8xf32>
    %27 = vector.multi_reduction <maximumf>, %26, %cst_10 [1] : vector<8x8xf32> to vector<8xf32>
    %28 = vector.shape_cast %27 : vector<8xf32> to vector<8x1xf32>
    %29 = vector.broadcast %28 : vector<8x1xf32> to vector<8x8xf32>
    %30 = arith.subf %26, %29 : vector<8x8xf32>
    %31 = math.exp %30 : vector<8x8xf32>
    %cst_11 = arith.constant dense<0.000000e+00> : vector<8xf32>
    %32 = vector.multi_reduction <add>, %31, %cst_11 [1] : vector<8x8xf32> to vector<8xf32>
    %33 = vector.shape_cast %32 : vector<8xf32> to vector<8x1xf32>
    %34 = tpu.reciprocal %33 {approx = true} : vector<8x1xf32> -> vector<8x1xf32>
    %35 = vector.broadcast %34 : vector<8x1xf32> to vector<8x8xf32>
    %36 = arith.mulf %31, %35 : vector<8x8xf32>
    %37 = arith.truncf %36 : vector<8x8xf32> to vector<8x8xbf16>
    %cst_12 = arith.constant dense<0.000000e+00> : vector<8x32xf32>
    %38 = tpu.matmul %37, %10, %cst_12 {dimension_numbers = #tpu.dot_dimension_numbers<[1], [0], [0], [1], [0, 0, 1, 1], [], []>} : vector<8x8xbf16>, vector<8x32xbf16>, vector<8x32xf32> -> vector<8x32xf32>
    %c0_13 = arith.constant 0 : index
    %c0_14 = arith.constant 0 : index
    %c0_15 = arith.constant 0 : index
    %39 = vector.load %arg5[%c0_13, %c0_14, %c0_15] : memref<1x8x32xf32, #tpu.memory_space<vmem>>, vector<1x8x32xf32>
    %40 = vector.shape_cast %39 : vector<1x8x32xf32> to vector<8x32xf32>
    %41 = vector.shape_cast %38 : vector<8x32xf32> to vector<1x8x32xf32>
    tpu.vector_store %arg5[%c0_13, %c0_14, %c0_15], %41 {strides = array<i32>} : memref<1x8x32xf32, #tpu.memory_space<vmem>>, vector<1x8x32xf32>,
    return
  }
  func.func @transform_0(%arg0: i32) -> (i32, i32, i32) {
    %c0_i32 = arith.constant 0 : i32
    %c0_i32_0 = arith.constant 0 : i32
    %c0_i32_1 = arith.constant 0 : i32
    return %arg0, %c0_i32, %c0_i32_0 : i32, i32, i32
  }
  func.func @transform_1(%arg0: i32) -> (i32, i32) {
    %c0_i32 = arith.constant 0 : i32
    %c0_i32_0 = arith.constant 0 : i32
    %c0_i32_1 = arith.constant 0 : i32
    return %c0_i32, %c0_i32_0 : i32, i32
  }
  func.func @transform_2(%arg0: i32) -> (i32, i32) {
    %c0_i32 = arith.constant 0 : i32
    %c0_i32_0 = arith.constant 0 : i32
    %c0_i32_1 = arith.constant 0 : i32
    return %c0_i32, %c0_i32_0 : i32, i32
  }
  func.func @transform_3(%arg0: i32) -> (i32, i32) {
    %c0_i32 = arith.constant 0 : i32
    %c0_i32_0 = arith.constant 0 : i32
    %c0_i32_1 = arith.constant 0 : i32
    return %c0_i32, %c0_i32_0 : i32, i32
  }
  func.func @transform_4(%arg0: i32) -> (i32, i32, i32) {
    %c0_i32 = arith.constant 0 : i32
    %c0_i32_0 = arith.constant 0 : i32
    %c0_i32_1 = arith.constant 0 : i32
    return %arg0, %c0_i32, %c0_i32_0 : i32, i32, i32
  }
}

</mosaic_0001>

<llo_original>
// kernel: tpu_custom_call.1
$region0: #{tpu_custom_call.1}
  #allocation0 [shape = 'u32[]', space=smem, size = 0x4, offset = 0x4, fixed_abs, tag = 'smem constant byte address 0x4 - core index']
  #allocation1 [shape = 'u32[144,128]{1,0:T(1,128)}', space=vmem, size = 0x12000, scoped, tag = 'internal scratch']
  %s0 = inlined_call_operand.hbm [shape: f32[2,8,32], index: 0, kind: input, shape index: {}]
  %s1 = inlined_call_operand.hbm [shape: bf16[32,96], index: 1, kind: input, shape index: {}]
  %s2 = inlined_call_operand.hbm [shape: f32[8,16], index: 2, kind: input, shape index: {}]
  %s3 = inlined_call_operand.hbm [shape: f32[8,16], index: 3, kind: input, shape index: {}]
  %s4 = inlined_call_operand.hbm [shape: f32[2,8,32], index: 4, kind: output, shape index: {}]
  %s5 = sld [smem:[#allocation0]]
  $region65: #{tpu_custom_call.1} parent=0
    _
  %s7 = ssub.s32 1, %s5
  %s8 = scalar_select 0, %s7, %s5
  $region1: #{tpu_custom_call.1} parent=0
    #allocation2 [shape = 'u8[8192]{0}', space=vmem, size = 0x2000, scoped, tag = 'input window, operand 0']
    #allocation3 [shape = 's32[2]{0}', space=sflag, size = 0x8, scoped, tag = 'scoped memory for tpu_custom_call.1']
    #allocation4 [shape = 's32[2]{0}', space=sflag, size = 0x8, scoped, tag = 'scoped memory for tpu_custom_call.1']
    #allocation5 [shape = 'u8[8192]{0}', space=vmem, size = 0x2000, scoped, tag = 'input window, operand 1, single buffered']
    #allocation6 [shape = 's32[1]{0}', space=sflag, size = 0x4, scoped, tag = 'scoped memory for tpu_custom_call.1']
    #allocation7 [shape = 'u8[4096]{0}', space=vmem, size = 0x1000, scoped, tag = 'input window, operand 2, single buffered']
    #allocation8 [shape = 'u8[4096]{0}', space=vmem, size = 0x1000, scoped, tag = 'input window, operand 3, single buffered']
    #allocation9 [shape = 's32[1]{0}', space=sflag, size = 0x4, scoped, tag = 'scoped memory for tpu_custom_call.1']
    #allocation10 [shape = 'u8[8192]{0}', space=vmem, size = 0x2000, scoped, tag = 'output window, operand 0']
    %9 = vsyncpa [#allocation3], 0
    %s10 = scalar_lea.sflag [#allocation3], 1
    %11 = vsyncpa %s10, 0
    %12 = vsyncpa [#allocation6], 0
    %13 = vsyncpa [#allocation9], 0
    %14 = vsyncpa [#allocation4], 0
    %s15 = scalar_lea.sflag [#allocation4], 1
    %16 = vsyncpa %s15, 0
    loop: start=0, step=1, limit=4
    $region2: #{tpu_custom_call.1} parent=1 // loop_pre_header
      _
    $region3: #{tpu_custom_call.1} parent=1 // loop_header
      %s18 = sphi 0, %s22
      %p19 = scmp.ge.s32.totalorder %s18, 4
      %s28 = sphi 0, %s30
      %s31 = sphi 0, %s28
      %s32 = sphi 0, %s31
      %s48 = sphi 0, %s32
      %s52 = sphi 0, %s52
      %s54 = sphi 0, %s52
      %s55 = sphi 0, %s54
      %s69 = sphi 0, %s55
      %s73 = sphi 0, %s73
      %s75 = sphi 0, %s73
      %s76 = sphi 0, %s75
      %s90 = sphi 0, %s76
      %s94 = sphi 0, %s94
      %s96 = sphi 0, %s94
      %s97 = sphi 0, %s96
      %s111 = sphi 0, %s97
      %s117 = sphi 0, %s119
      %s120 = sphi 0, %s117
      %s121 = sphi 0, %s120
      %s137 = sphi 0, %s121
    $region4: #{tpu_custom_call.1} parent=1 // loop_header_branch
      %21 = sbr.rel (%p19) target = $region8
    $region5: #{tpu_custom_call.1} parent=1 // loop_body
      %s23 = ssub.s32 %s18, 1
      %s24 = ssub.s32 %s18, 2
      %s25 = sadd.s32 %s18, 1
      %s26 = ssub.s32 %s18, %s25
      %p27 = scmp.eq.s32.totalorder %s26, 0
      %s29 = sadd.s32 %s28, 1
      %s30 = scalar_select %p27, %s28, %s29
      %p33 = pneg %p27
      %p34 = scmp.eq.s32.totalorder %s18, 1
      %p35 = por %p33, %p34
      %p36 = scmp.ne.s32.totalorder %s28, %s31
      %p37 = scmp.eq.s32.totalorder %s18, 0
      %p38 = por %p36, %p37
      %p39 = scmp.ne.s32.totalorder %s28, %s31
      %p40 = scmp.eq.s32.totalorder %s23, 1
      %p41 = por %p39, %p40
      %p42 = scmp.ne.s32.totalorder %s31, %s32
      %p43 = scmp.eq.s32.totalorder %s23, 0
      %p44 = por %p42, %p43
      %p45 = scmp.ne.s32.totalorder %s31, %s32
      %p46 = scmp.eq.s32.totalorder %s24, 1
      %p47 = por %p45, %p46
      %p49 = scmp.ne.s32.totalorder %s32, %s48
      %p50 = scmp.eq.s32.totalorder %s24, 0
      %p51 = por %p49, %p50
      %s53 = sadd.s32 %s52, 1
      %p56 = scmp.eq.s32.totalorder %s18, 1
      %p57 = scmp.ne.s32.totalorder %s52, %s54
      %p58 = scmp.eq.s32.totalorder %s18, 0
      %p59 = por %p57, %p58
      %p60 = scmp.ne.s32.totalorder %s52, %s54
      %p61 = scmp.eq.s32.totalorder %s23, 1
      %p62 = por %p60, %p61
      %p63 = scmp.ne.s32.totalorder %s54, %s55
      %p64 = scmp.eq.s32.totalorder %s23, 0
      %p65 = por %p63, %p64
      %p66 = scmp.ne.s32.totalorder %s54, %s55
      %p67 = scmp.eq.s32.totalorder %s24, 1
      %p68 = por %p66, %p67
      %p70 = scmp.ne.s32.totalorder %s55, %s69
      %p71 = scmp.eq.s32.totalorder %s24, 0
      %p72 = por %p70, %p71
      %s74 = sadd.s32 %s73, 1
      %p77 = scmp.eq.s32.totalorder %s18, 1
      %p78 = scmp.ne.s32.totalorder %s73, %s75
      %p79 = scmp.eq.s32.totalorder %s18, 0
      %p80 = por %p78, %p79
      %p81 = scmp.ne.s32.totalorder %s73, %s75
      %p82 = scmp.eq.s32.totalorder %s23, 1
      %p83 = por %p81, %p82
      %p84 = scmp.ne.s32.totalorder %s75, %s76
      %p85 = scmp.eq.s32.totalorder %s23, 0
      %p86 = por %p84, %p85
      %p87 = scmp.ne.s32.totalorder %s75, %s76
      %p88 = scmp.eq.s32.totalorder %s24, 1
      %p89 = por %p87, %p88
      %p91 = scmp.ne.s32.totalorder %s76, %s90
      %p92 = scmp.eq.s32.totalorder %s24, 0
      %p93 = por %p91, %p92
      %s95 = sadd.s32 %s94, 1
      %p98 = scmp.eq.s32.totalorder %s18, 1
      %p99 = scmp.ne.s32.totalorder %s94, %s96
      %p100 = scmp.eq.s32.totalorder %s18, 0
      %p101 = por %p99, %p100
      %p102 = scmp.ne.s32.totalorder %s94, %s96
      %p103 = scmp.eq.s32.totalorder %s23, 1
      %p104 = por %p102, %p103
      %p105 = scmp.ne.s32.totalorder %s96, %s97
      %p106 = scmp.eq.s32.totalorder %s23, 0
      %p107 = por %p105, %p106
      %p108 = scmp.ne.s32.totalorder %s96, %s97
      %p109 = scmp.eq.s32.totalorder %s24, 1
      %p110 = por %p108, %p109
      %p112 = scmp.ne.s32.totalorder %s97, %s111
      %p113 = scmp.eq.s32.totalorder %s24, 0
      %p114 = por %p112, %p113
      %s115 = ssub.s32 %s18, %s25
      %p116 = scmp.eq.s32.totalorder %s115, 0
      %s118 = sadd.s32 %s117, 1
      %s119 = scalar_select %p116, %s117, %s118
      %p122 = pneg %p116
      %p123 = scmp.eq.s32.totalorder %s18, 1
      %p124 = por %p122, %p123
      %p125 = scmp.ne.s32.totalorder %s117, %s120
      %p126 = scmp.eq.s32.totalorder %s18, 0
      %p127 = por %p125, %p126
      %p128 = scmp.ne.s32.totalorder %s117, %s120
      %p129 = scmp.eq.s32.totalorder %s23, 1
      %p130 = por %p128, %p129
      %p131 = scmp.ne.s32.totalorder %s120, %s121
      %p132 = scmp.eq.s32.totalorder %s23, 0
      %p133 = por %p131, %p132
      %p134 = scmp.ne.s32.totalorder %s120, %s121
      %p135 = scmp.eq.s32.totalorder %s24, 1
      %p136 = por %p134, %p135
      %p138 = scmp.ne.s32.totalorder %s121, %s137
      %p139 = scmp.eq.s32.totalorder %s24, 0
      %p140 = por %p138, %p139
      %p141 = scmp.le.s32.totalorder 1, %s18
      %p142 = scmp.lt.s32.totalorder %s18, 3
      %p143 = pnand %p141, %p142
      %p144 = pneg %p143
      // Predicated region
      $region9: #{tpu_custom_call.1} parent=5 // pred_check
        _
      $region10: #{tpu_custom_call.1} parent=5 // pred_check_branch
        %146 = sbr.rel (%p143) target = $region12
      $region11: #{tpu_custom_call.1} parent=5 // pred_region
        %s147 = ssub.s32 %s18, 1
        // Predicated region
        $region13: #{tpu_custom_call.1} parent=11 // pred_check
          %p148 = pneg %p65
        $region14: #{tpu_custom_call.1} parent=11 // pred_check_branch
          %150 = sbr.rel (%p148) target = $region16
        $region15: #{tpu_custom_call.1} parent=11 // pred_region
          %s152 = ssub.s32 256, 256
          %153 = vsyncadd [#allocation6], %s152
          %s154 = sshll.u32 [#allocation5], 4
          %s155 = int_to_ptr.vmem [resolvable:$true] %s154
          %160 = dma.hbm_to_vmem [thread:$0]  %s1, 256, %s155, [#allocation6], 64, 64, 4
        $region16: #{tpu_custom_call.1} parent=11 // pred_fallthru
          _
        // Predicated region
        $region17: #{tpu_custom_call.1} parent=11 // pred_check
          %p161 = pneg %p86
        $region18: #{tpu_custom_call.1} parent=11 // pred_check_branch
          %163 = sbr.rel (%p161) target = $region20
        $region19: #{tpu_custom_call.1} parent=11 // pred_region
          %s165 = ssub.s32 128, 128
          %166 = vsyncadd [#allocation6], %s165
          %s168 = sshll.u32 [#allocation7], 4
          %s169 = int_to_ptr.vmem [resolvable:$true] %s168
          %171 = dma.hbm_to_vmem [thread:$0]  %s2, 128, %s169, [#allocation6]
        $region20: #{tpu_custom_call.1} parent=11 // pred_fallthru
          _
        // Predicated region
        $region21: #{tpu_custom_call.1} parent=11 // pred_check
          %p172 = pneg %p107
        $region22: #{tpu_custom_call.1} parent=11 // pred_check_branch
          %174 = sbr.rel (%p172) target = $region24
        $region23: #{tpu_custom_call.1} parent=11 // pred_region
          %s176 = ssub.s32 128, 128
          %177 = vsyncadd [#allocation9], %s176
          %s179 = sshll.u32 [#allocation8], 4
          %s180 = int_to_ptr.vmem [resolvable:$true] %s179
          %182 = dma.hbm_to_vmem [thread:$0]  %s3, 128, %s180, [#allocation9]
        $region24: #{tpu_custom_call.1} parent=11 // pred_fallthru
          _
      $region12: #{tpu_custom_call.1} parent=5 // pred_fallthru
        _
      %p183 = scmp.lt.s32.totalorder %s18, 2
      // Predicated region
      $region25: #{tpu_custom_call.1} parent=5 // pred_check
        %p184 = pneg %p183
      $region26: #{tpu_custom_call.1} parent=5 // pred_check_branch
        %186 = sbr.rel (%p184) target = $region28
      $region27: #{tpu_custom_call.1} parent=5 // pred_region
        // Predicated region
        $region29: #{tpu_custom_call.1} parent=27 // pred_check
          %p187 = pneg %p38
        $region30: #{tpu_custom_call.1} parent=27 // pred_check_branch
          %189 = sbr.rel (%p187) target = $region32
        $region31: #{tpu_custom_call.1} parent=27 // pred_region
          %s190 = sand.u32 %s28, 1
          %s191 = scalar_lea.sflag [#allocation3], %s190
          %s192 = sand.u32 %s28, 1
          %s193 = smul.addr %s192, 8
          %s194 = scalar_lea.vmem [#allocation2], %s193
          %s196 = ssub.s32 128, 128
          %197 = vsyncadd %s191, %s196
          %s198 = smul.addr %s18, 128
          %s199 = scalar_lea.hbm %s0, %s198
          %s201 = sshll.u32 %s194, 4
          %s202 = int_to_ptr.vmem [resolvable:$true] %s201
          %204 = dma.hbm_to_vmem [thread:$0]  %s199, 128, %s202, %s191
        $region32: #{tpu_custom_call.1} parent=27 // pred_fallthru
          _
      $region28: #{tpu_custom_call.1} parent=5 // pred_fallthru
        _
      %p205 = scmp.le.s32.totalorder 1, %s18
      %p206 = scmp.lt.s32.totalorder %s18, 3
      %p207 = pnand %p205, %p206
      %p208 = pneg %p207
      // Predicated region
      $region33: #{tpu_custom_call.1} parent=5 // pred_check
        _
      $region34: #{tpu_custom_call.1} parent=5 // pred_check_branch
        %210 = sbr.rel (%p207) target = $region36
      $region35: #{tpu_custom_call.1} parent=5 // pred_region
        %s211 = ssub.s32 %s18, 1
        %s212 = sand.u32 %s31, 1
        %s213 = scalar_lea.sflag [#allocation3], %s212
        %s214 = sand.u32 %s31, 1
        %s215 = smul.addr %s214, 8
        %s216 = scalar_lea.vmem [#allocation2], %s215
        // Predicated region
        $region37: #{tpu_custom_call.1} parent=35 // pred_check
          %p217 = pneg %p44
        $region38: #{tpu_custom_call.1} parent=35 // pred_check_branch
          %219 = sbr.rel (%p217) target = $region40
        $region39: #{tpu_custom_call.1} parent=35 // pred_region
          %220 = dma.done %s213, 128
        $region40: #{tpu_custom_call.1} parent=35 // pred_fallthru
          _
        // Predicated region
        $region41: #{tpu_custom_call.1} parent=35 // pred_check
          %p221 = pneg %p65
        $region42: #{tpu_custom_call.1} parent=35 // pred_check_branch
          %223 = sbr.rel (%p221) target = $region44
        $region43: #{tpu_custom_call.1} parent=35 // pred_region
          %224 = dma.done [#allocation6], 256
        $region44: #{tpu_custom_call.1} parent=35 // pred_fallthru
          _
        // Predicated region
        $region45: #{tpu_custom_call.1} parent=35 // pred_check
          %p225 = pneg %p86
        $region46: #{tpu_custom_call.1} parent=35 // pred_check_branch
          %227 = sbr.rel (%p225) target = $region48
        $region47: #{tpu_custom_call.1} parent=35 // pred_region
          %228 = dma.done [#allocation6], 128
        $region48: #{tpu_custom_call.1} parent=35 // pred_fallthru
          _
        // Predicated region
        $region49: #{tpu_custom_call.1} parent=35 // pred_check
          %p229 = pneg %p107
        $region50: #{tpu_custom_call.1} parent=35 // pred_check_branch
          %231 = sbr.rel (%p229) target = $region52
        $region51: #{tpu_custom_call.1} parent=35 // pred_region
          %232 = dma.done [#allocation9], 128
        $region52: #{tpu_custom_call.1} parent=35 // pred_fallthru
          _
        %s233 = sand.u32 %s31, 1
        %s234 = scalar_lea.sflag [#allocation3], %s233
        %s235 = sand.u32 %s31, 1
        %s236 = smul.addr %s235, 8
        %s237 = scalar_lea.vmem [#allocation2], %s236
        %p238 = pneg %p44
        %p239 = pneg %p41
        %p240 = pneg %p65
        %p241 = pneg %p62
        %p242 = pneg %p86
        %p243 = pneg %p83
        %p244 = pneg %p107
        %p245 = pneg %p104
        %p246 = pneg %p133
        %p247 = pneg %p130
        %s248 = sand.u32 %s120, 1
        %s249 = scalar_lea.sflag [#allocation4], %s248
        %s250 = sand.u32 %s120, 1
        %s251 = smul.addr %s250, 8
        %s252 = scalar_lea.vmem [#allocation10], %s251
        %v254 = vld [vmem:[%s216] sm:$0xff]
        %v255 = vpack.c.bf16 %v254, %v254
        %v256 = vld [vmem:[#allocation5] sm:$0xf]
        %v257 = vld [vmem:[#allocation5 + $0x4] sm:$0xf]
        %v258 = vld [vmem:[#allocation5 + $0x8] sm:$0xf]
        %v259 = vld [vmem:[#allocation5 + $0xc] sm:$0xf]
        %v264 = vunpack.c.l.b16 %v256
        %v265 = vunpack.c.l.b16 %v257
        %v266 = vunpack.c.l.b16 %v258
        %v267 = vunpack.c.l.b16 %v259
        %v268 = vpack.c.b16 %v265, %v264
        %v269 = vpack.c.b16 %v267, %v266
        %vm272 = vcmask 261120
        %v274 = vsel %vm272, %v255, 0
        %276 = vmatprep.subr.bf16.mxu0 0
        %277 = vmatpush1.bf16.msra.mxu0 0
        %278 = vmatprep.subr.bf16.mxu0 0
        %279 = vmatpush1.bf16.msra.mxu0 0
        %280 = vmatprep.subr.bf16.mxu0 0
        %281 = vmatpush1.bf16.msra.mxu0 0
        %282 = vmatprep.subr.bf16.mxu0 0
        %283 = vmatpush1.bf16.msra.mxu0 0
        %284 = vmatprep.subr.bf16.mxu0 0
        %285 = vmatpush1.bf16.msra.mxu0 0
        %286 = vmatprep.subr.bf16.mxu0 0
        %287 = vmatpush1.bf16.msra.mxu0 0
        %288 = vmatprep.subr.bf16.mxu0 0
        %289 = vmatpush1.bf16.msra.mxu0 %v269
        %290 = vmatprep.subr.bf16.mxu0 0
        %291 = vmatpush1.bf16.msra.mxu0 %v268
        %292 = vmatprep.subr.bf16.mxu0 0
        %293 = vmatpush2.bf16.msra.mxu0 0
        %294 = vmatprep.subr.bf16.mxu0 0
        %295 = vmatpush2.bf16.msra.mxu0 0
        %296 = vmatprep.subr.bf16.mxu0 0
        %297 = vmatpush2.bf16.msra.mxu0 0
        %298 = vmatprep.subr.bf16.mxu0 0
        %299 = vmatpush2.bf16.msra.mxu0 0
        %300 = vmatprep.subr.bf16.mxu0 0
        %301 = vmatpush2.bf16.msra.mxu0 0
        %302 = vmatprep.subr.bf16.mxu0 0
        %303 = vmatpush2.bf16.msra.mxu0 0
        %304 = vmatprep.subr.bf16.mxu0 0
        %305 = vmatpush2.bf16.msra.mxu0 0
        %306 = vmatprep.subr.bf16.mxu0 0
        %307 = vmatpush2.bf16.msra.mxu0 0
        %308 = vmatprep.mubr.bf16.mxu0 0
        %309 = vmatmul.mubr.bf16.gmra.mxu0 %v274
        %v310 = vpop.f32.mrf.mxu0
        %v311 = vadd.f32 0.0, %v310
        %v312 = vpop.f32.mrf.mxu0
        %v313 = vpop.f32.mrf.mxu0
        %v314 = vpop.f32.mrf.mxu0
        %315 = vdwg.mxu0
        %v316 = vpack.c.bf16 %v311, %v311
        %v317 = vld [vmem:[#allocation7] sm:$0xff]
        %v318 = vld [vmem:[#allocation8] sm:$0xff]
        %v319 = vmul.f32 %v311, %v317
        %321 = vrot.lane.b32.xlu0 %v318, 16
        %v322 = vpop.permute.xlu0 %321
        %v324 = vmul.f32 %v311, %v322
        %326 = vrot.lane.b32.xlu0 %v324, 112
        %v327 = vpop.permute.xlu0 %326
        %v329 = vadd.f32 %v319, %v327
        %v330 = vpack.c.bf16 %v329, %v329
        %332 = vrot.lane.b32.xlu0 %v317, 32
        %v333 = vpop.permute.xlu0 %332
        %v335 = vmul.f32 %v311, %v333
        %336 = vrot.lane.b32.xlu0 %v318, 48
        %v337 = vpop.permute.xlu0 %336
        %v339 = vmul.f32 %v311, %v337
        %341 = vrot.lane.b32.xlu0 %v339, 112
        %v342 = vpop.permute.xlu0 %341
        %v344 = vadd.f32 %v335, %v342
        %v345 = vpack.c.bf16 %v344, %v344
        %347 = vrot.lane.b32.xlu0 %v345, 96
        %v348 = vpop.permute.xlu0 %347
        %vm349 = vcmask 130048
        %v351 = vsel %vm349, %v330, 0
        %v354 = vsel %vm349, %v348, 0
        %356 = vmatprep.subr.bf16.mxu0 0
        %357 = vmatpush1.bf16.xpose.msra.mxu0 0
        %358 = vmatprep.subr.bf16.mxu0 0
        %359 = vmatpush1.bf16.xpose.msra.mxu0 0
        %360 = vmatprep.subr.bf16.mxu0 0
        %361 = vmatpush1.bf16.xpose.msra.mxu0 0
        %362 = vmatprep.subr.bf16.mxu0 0
        %363 = vmatpush1.bf16.xpose.msra.mxu0 0
        %364 = vmatprep.subr.bf16.mxu0 0
        %365 = vmatpush1.bf16.xpose.msra.mxu0 0
        %366 = vmatprep.subr.bf16.mxu0 0
        %367 = vmatpush1.bf16.xpose.msra.mxu0 0
        %368 = vmatprep.subr.bf16.mxu0 0
        %369 = vmatpush1.bf16.xpose.msra.mxu0 0
        %370 = vmatprep.subr.bf16.mxu0 0
        %371 = vmatpush1.bf16.xpose.msra.mxu0 %v354
        %372 = vmatprep.subr.bf16.mxu0 0
        %373 = vmatpush2.bf16.xpose.msra.mxu0 0
        %374 = vmatprep.subr.bf16.mxu0 0
        %375 = vmatpush2.bf16.xpose.msra.mxu0 0
        %376 = vmatprep.subr.bf16.mxu0 0
        %377 = vmatpush2.bf16.xpose.msra.mxu0 0
        %378 = vmatprep.subr.bf16.mxu0 0
        %379 = vmatpush2.bf16.xpose.msra.mxu0 0
        %380 = vmatprep.subr.bf16.mxu0 0
        %381 = vmatpush2.bf16.xpose.msra.mxu0 0
        %382 = vmatprep.subr.bf16.mxu0 0
        %383 = vmatpush2.bf16.xpose.msra.mxu0 0
        %384 = vmatprep.subr.bf16.mxu0 0
        %385 = vmatpush2.bf16.xpose.msra.mxu0 0
        %386 = vmatprep.subr.bf16.mxu0 0
        %387 = vmatpush2.bf16.xpose.msra.mxu0 0
        %388 = vmatprep.mubr.bf16.mxu0 0
        %389 = vmatmul.mubr.bf16.gmra.mxu0 %v351
        %v390 = vpop.f32.mrf.mxu0
        %v391 = vadd.f32 0.0, %v390
        %v392 = vpop.f32.mrf.mxu0
        %v393 = vpop.f32.mrf.mxu0
        %v394 = vpop.f32.mrf.mxu0
        %395 = vdwg.mxu0
        %v396 = vlaneseq
        %v397 = vshrl.u32 %v396, 7
        %v398 = vlaneseq
        %v399 = vand.u32 %v398, 127
        %vm400 = vcmp.ge.s32.totalorder %v397, %v399
        %v401 = vsel %vm400, %v391, -inf
        %vm402 = vcmask 64512
        %v403 = vsel %vm402, %v401, -inf
        %404 = vmax.xlane.f32.xlu0 %v403
        %v405 = vpop.xlane.xlu0 %404
        %v406 = vsub.f32 %v401, %v405
        %v407 = vmul.f32 %v406, 1.442695
        %v408 = vpow.pop %v407
        %v409 = vsel %vm402, %v408, 0.0
        %410 = vadd.xlane.f32.xlu0 %v409
        %v411 = vpop.xlane.xlu0 %410
        %v412 = vrcp.pop %v411
        %v413 = vmul.f32 %v408, %v412
        %v414 = vpack.c.bf16 %v413, %v413
        %416 = vrot.lane.b32.xlu0 %v316, 64
        %v417 = vpop.permute.xlu0 %416
        %v419 = vsel %vm402, %v414, 0
        %vm421 = vcmask 1043456
        %v423 = vsel %vm421, %v417, 0
        %425 = vmatprep.subr.bf16.mxu0 0
        %426 = vmatpush1.bf16.msra.mxu0 0
        %427 = vmatprep.subr.bf16.mxu0 0
        %428 = vmatpush1.bf16.msra.mxu0 0
        %429 = vmatprep.subr.bf16.mxu0 0
        %430 = vmatpush1.bf16.msra.mxu0 0
        %431 = vmatprep.subr.bf16.mxu0 0
        %432 = vmatpush1.bf16.msra.mxu0 0
        %433 = vmatprep.subr.bf16.mxu0 0
        %434 = vmatpush1.bf16.msra.mxu0 0
        %435 = vmatprep.subr.bf16.mxu0 0
        %436 = vmatpush1.bf16.msra.mxu0 0
        %437 = vmatprep.subr.bf16.mxu0 0
        %438 = vmatpush1.bf16.msra.mxu0 0
        %439 = vmatprep.subr.bf16.mxu0 0
        %440 = vmatpush1.bf16.msra.mxu0 %v423
        %441 = vmatprep.subr.bf16.mxu0 0
        %442 = vmatpush2.bf16.msra.mxu0 0
        %443 = vmatprep.subr.bf16.mxu0 0
        %444 = vmatpush2.bf16.msra.mxu0 0
        %445 = vmatprep.subr.bf16.mxu0 0
        %446 = vmatpush2.bf16.msra.mxu0 0
        %447 = vmatprep.subr.bf16.mxu0 0
        %448 = vmatpush2.bf16.msra.mxu0 0
        %449 = vmatprep.subr.bf16.mxu0 0
        %450 = vmatpush2.bf16.msra.mxu0 0
        %451 = vmatprep.subr.bf16.mxu0 0
        %452 = vmatpush2.bf16.msra.mxu0 0
        %453 = vmatprep.subr.bf16.mxu0 0
        %454 = vmatpush2.bf16.msra.mxu0 0
        %455 = vmatprep.subr.bf16.mxu0 0
        %456 = vmatpush2.bf16.msra.mxu0 0
        %457 = vmatprep.mubr.bf16.mxu0 0
        %458 = vmatmul.mubr.bf16.gmra.mxu0 %v419
        %v459 = vpop.f32.mrf.mxu0
        %v460 = vadd.f32 0.0, %v459
        %v461 = vpop.f32.mrf.mxu0
        %v462 = vpop.f32.mrf.mxu0
        %v463 = vpop.f32.mrf.mxu0
        %464 = vdwg.mxu0
        %465 = vst.msk [vmem:[%s252] sm:$0xff] %vm272, %v460
        %s466 = sand.u32 %s120, 1
        %s467 = scalar_lea.sflag [#allocation4], %s466
        %s468 = sand.u32 %s120, 1
        %s469 = smul.addr %s468, 8
        %s470 = scalar_lea.vmem [#allocation10], %s469
        // Predicated region
        $region53: #{tpu_custom_call.1} parent=35 // pred_check
          %p471 = pneg %p130
        $region54: #{tpu_custom_call.1} parent=35 // pred_check_branch
          %473 = sbr.rel (%p471) target = $region56
        $region55: #{tpu_custom_call.1} parent=35 // pred_region
          %s475 = ssub.s32 128, 128
          %476 = vsyncadd %s467, %s475
          %s477 = smul.addr %s23, 128
          %s478 = scalar_lea.hbm %s4, %s477
          %s480 = sshll.u32 %s470, 4
          %s481 = int_to_ptr.vmem [resolvable:$true] %s480
          %483 = dma.vmem_to_hbm [thread:$0]  %s481, 128, %s478, %s467
        $region56: #{tpu_custom_call.1} parent=35 // pred_fallthru
          _
      $region36: #{tpu_custom_call.1} parent=5 // pred_fallthru
        _
      %p484 = scmp.le.s32.totalorder 2, %s18
      // Predicated region
      $region57: #{tpu_custom_call.1} parent=5 // pred_check
        %p485 = pneg %p484
      $region58: #{tpu_custom_call.1} parent=5 // pred_check_branch
        %487 = sbr.rel (%p485) target = $region60
      $region59: #{tpu_custom_call.1} parent=5 // pred_region
        %s488 = ssub.s32 %s18, 2
        // Predicated region
        $region61: #{tpu_custom_call.1} parent=59 // pred_check
          %p489 = pneg %p136
        $region62: #{tpu_custom_call.1} parent=59 // pred_check_branch
          %491 = sbr.rel (%p489) target = $region64
        $region63: #{tpu_custom_call.1} parent=59 // pred_region
          %s492 = sand.u32 %s121, 1
          %s493 = scalar_lea.sflag [#allocation4], %s492
          %s494 = sand.u32 %s121, 1
          %s495 = smul.addr %s494, 8
          %s496 = scalar_lea.vmem [#allocation10], %s495
          %497 = dma.done %s493, 128
        $region64: #{tpu_custom_call.1} parent=59 // pred_fallthru
          _
      $region60: #{tpu_custom_call.1} parent=5 // pred_fallthru
        _
    $region6: #{tpu_custom_call.1} parent=1 // loop_footer
      %s22 = sadd.s32 1, %s18
    $region7: #{tpu_custom_call.1} parent=1 // loop_footer_branch
      %17 = sbr.rel target = $region3
    $region8: #{tpu_custom_call.1} parent=1 // loop_exit
      _
    %498 = vsyncpa [#allocation3], 1
    %s499 = scalar_lea.sflag [#allocation3], 1
    %500 = vsyncpa %s499, 1
    %501 = vsyncpa [#allocation6], 1
    %502 = vsyncpa [#allocation9], 1
    %503 = vsyncpa [#allocation4], 1
    %s504 = scalar_lea.sflag [#allocation4], 1
    %505 = vsyncpa %s504, 1

</llo_original>
